<compile_context>
chip_gen: v5e
topology: v5e:2x2
jax: 0.10.0
libtpu: 0.0.40
codegen_flags: <defaults>
</compile_context>

<pallas_src>
import jax
import jax.numpy as jnp
from jax.experimental import pallas as pl
from jax.experimental.pallas import tpu as pltpu


def _round_up(x, m):
    return (x + m - 1) // m * m


# ----------------------------------------------------------------------------
# Kernel: one batch-tile of rows per grid step; weights resident in VMEM.
# ----------------------------------------------------------------------------
def _mlp_kernel(x_ref,            # (TB, D)   bf16   streamed
                w1_ref,           # (D, H1)   bf16   resident (BN-folded)
                s1_ref,           # (1, H1)   f32    folded bias+BN shift
                w2_ref,           # (H1, H2)  bf16   resident (BN-folded)
                s2_ref,           # (1, H2)   f32
                w3_ref,           # (1, H2)   f32    final-layer weight row
                b3_ref,           # (1, 1)    f32    SMEM scalar
                out_ref):         # (TB, 1)   f32
    # ---- linear1 (+ folded bias/BN) + relu --------------------------------
    h1 = jnp.dot(x_ref[...], w1_ref[...], preferred_element_type=jnp.float32)
    h1 = jnp.maximum(h1 + s1_ref[...], 0.0)

    # ---- linear2 (+ folded bias/BN) + relu --------------------------------
    h2 = jnp.dot(h1.astype(jnp.bfloat16), w2_ref[...],
                 preferred_element_type=jnp.float32)
    h2 = jnp.maximum(h2 + s2_ref[...], 0.0)

    # ---- linear3 (H2 -> 1) as VPU mul + XLU cross-lane sum + sigmoid ------
    y = jnp.sum(h2 * w3_ref[...], axis=-1, keepdims=True) + b3_ref[0, 0]
    out_ref[...] = jax.nn.sigmoid(y).astype(out_ref.dtype)


# ----------------------------------------------------------------------------
# Wrapper
# ----------------------------------------------------------------------------
def mlp_forward(x, params, *, block_b=512):
    """x: (B, input_dim) f32.  Returns (B, 1) f32 sigmoid outputs.

    block_b: batch-tile size.  512 is a portable default (fits v5e/v7x VMEM
    budgets at the real module sizes); raise to 1024-2048 on v6e if desired.
    """
    B, Din = x.shape
    Dp, H1 = params["w1"].shape
    H2 = params["w2"].shape[1]

    # Zero-pad the feature dim to the padded weight layout; cast to bf16.
    if Din < Dp:
        x = jnp.pad(x, ((0, 0), (0, Dp - Din)))
    x = x.astype(jnp.bfloat16)

    # Zero-pad the batch to a multiple of the batch tile (multiple of 16 for
    # bf16 sublane packing); tail rows are sliced off afterwards.
    tb = min(block_b, _round_up(max(B, 1), 16))
    Bp = _round_up(B, tb)
    if Bp != B:
        x = jnp.pad(x, ((0, Bp - B), (0, 0)))
    grid = (Bp // tb,)

    flops = 2 * Bp * (Dp * H1 + H1 * H2 + H2)
    bytes_accessed = (Bp * Dp * 2                     # x (bf16)
                      + Dp * H1 * 2 + H1 * H2 * 2     # W1, W2 (bf16)
                      + (H1 + 2 * H2 + 1) * 4         # shifts, w3 row, b3
                      + Bp * 4)                       # output

    out = pl.pallas_call(
        _mlp_kernel,
        out_shape=jax.ShapeDtypeStruct((Bp, 1), jnp.float32),
        grid_spec=pltpu.PrefetchScalarGridSpec(
            num_scalar_prefetch=0,
            grid=grid,
            in_specs=[
                pl.BlockSpec((tb, Dp), lambda i: (i, 0)),     # x (streamed)
                pl.BlockSpec((Dp, H1), lambda i: (0, 0)),     # W1 (resident)
                pl.BlockSpec((1, H1), lambda i: (0, 0)),      # shift1
                pl.BlockSpec((H1, H2), lambda i: (0, 0)),     # W2 (resident)
                pl.BlockSpec((1, H2), lambda i: (0, 0)),      # shift2
                pl.BlockSpec((1, H2), lambda i: (0, 0)),      # w3 row
                pl.BlockSpec(memory_space=pltpu.MemorySpace.SMEM),  # b3
            ],
            out_specs=pl.BlockSpec((tb, 1), lambda i: (i, 0)),
        ),
        compiler_params=pltpu.CompilerParams(
            dimension_semantics=("parallel",),
            vmem_limit_bytes=48 * 1024 * 1024,
        ),
        cost_estimate=pl.CostEstimate(
            flops=flops, transcendentals=Bp, bytes_accessed=bytes_accessed),
    )(x, params["w1"], params["shift1"], params["w2"], params["shift2"],
      params["w3_row"], params["b3"])

    return out[:B]


# ----------------------------------------------------------------------------
# Parameter construction
# ----------------------------------------------------------------------------
def init_params(key, input_dim, hid_dim1, hid_dim2, eps=1e-5):
    """Raw (un-folded, un-padded) params mimicking PyTorch defaults:
    Linear: U(+-1/sqrt(fan_in)); BatchNorm1d eval-mode with running stats."""
    ks = jax.random.split(key, 10)

    def linear(kw, kb, fan_in, fan_out):
        bound = 1.0 / jnp.sqrt(fan_in)
        w = jax.random.uniform(kw, (fan_in, fan_out), jnp.float32, -bound, bound)
        b = jax.random.uniform(kb, (1, fan_out), jnp.float32, -bound, bound)
        return w, b

    w1, b1 = linear(ks[0], ks[1], input_dim, hid_dim1)
    w2, b2 = linear(ks[2], ks[3], hid_dim1, hid_dim2)
    w3, b3 = linear(ks[4], ks[5], hid_dim2, 1)

    def bn(kg, kb, n):
        gamma = 1.0 + 0.1 * jax.random.normal(kg, (1, n), jnp.float32)
        beta = 0.1 * jax.random.normal(kb, (1, n), jnp.float32)
        running_mean = jnp.zeros((1, n), jnp.float32)
        running_var = jnp.ones((1, n), jnp.float32)
        scale = gamma * jax.lax.rsqrt(running_var + eps)
        shift = beta - running_mean * scale
        return scale, shift

    s1, t1 = bn(ks[6], ks[7], hid_dim1)
    s2, t2 = bn(ks[8], ks[9], hid_dim2)

    return dict(w1=w1, b1=b1, w2=w2, b2=b2, w3=w3, b3=b3,
                bn1_scale=s1, bn1_shift=t1, bn2_scale=s2, bn2_shift=t2)


def pack_params(raw):
    """Fold bias + eval-mode BatchNorm into the weights, zero-pad all feature
    dims to multiples of 128 (MXU / lane alignment) and cast the two big
    weight matrices to bf16 (f32 accumulation happens inside the kernel)."""
    w1f = raw["w1"] * raw["bn1_scale"]                              # (D, H1)
    t1 = raw["b1"] * raw["bn1_scale"] + raw["bn1_shift"]            # (1, H1)
    w2f = raw["w2"] * raw["bn2_scale"]                              # (H1, H2)
    t2 = raw["b2"] * raw["bn2_scale"] + raw["bn2_shift"]            # (1, H2)
    w3_row = raw["w3"].T                                            # (1, H2)
    b3 = raw["b3"].reshape(1, 1)

    D, H1 = w1f.shape
    H2 = w2f.shape[1]
    Dp, H1p, H2p = (_round_up(d, 128) for d in (D, H1, H2))

    def pad2(a, rows, cols):
        return jnp.pad(a, ((0, rows - a.shape[0]), (0, cols - a.shape[1])))

    return dict(
        w1=pad2(w1f, Dp, H1p).astype(jnp.bfloat16),
        shift1=pad2(t1, 1, H1p),
        w2=pad2(w2f, H1p, H2p).astype(jnp.bfloat16),
        shift2=pad2(t2, 1, H2p),
        w3_row=pad2(w3_row, 1, H2p),
        b3=b3,
    )


# ----------------------------------------------------------------------------
# Pure-JAX reference (f32, un-folded params) for the correctness check.
# ----------------------------------------------------------------------------
def _ref(x, p):
    h1 = x @ p["w1"] + p["b1"]
    h1 = jnp.maximum(h1 * p["bn1_scale"] + p["bn1_shift"], 0.0)
    h2 = h1 @ p["w2"] + p["b2"]
    h2 = jnp.maximum(h2 * p["bn2_scale"] + p["bn2_shift"], 0.0)
    return jax.nn.sigmoid(h2 @ p["w3"] + p["b3"])


if __name__ == "__main__":
    # Small shapes consistent with the module: (B, T, F) feature patch
    # flattened to (B, T*F); hidden dims scaled down from the real 600/100.
    B, T, F = 2, 8, 64
    INPUT_DIM = T * F          # 512 (real module: 101*40 = 4040 -> padded 4096)
    HID1, HID2 = 256, 128      # real module: 600/100 -> padded 640/128

    key = jax.random.PRNGKey(0)
    k_x, k_p = jax.random.split(key)

    src = jax.random.normal(k_x, (B, T, F), jnp.float32)
    x = src.reshape(-1, INPUT_DIM)               # torch: src.view(-1, input_dim)

    raw = init_params(k_p, INPUT_DIM, HID1, HID2)
    params = pack_params(raw)

    out = mlp_forward(x, params)
    out = jax.block_until_ready(out)

    expected = _ref(x, raw)
    assert out.shape == (B, 1), out.shape
    max_err = float(jnp.max(jnp.abs(out - expected)))
    # bf16 weights/activations with f32 accumulation -> small mismatch vs f32 ref
    assert max_err < 2e-2, f"max abs err {max_err}"

    print("KERNEL_OK")
</pallas_src>

<mosaic_0001>
module attributes {stable_mosaic.version = 11 : i64} {
  func.func @_mlp_kernel(%arg0: i32, %arg1: memref<16x512xbf16, #tpu.memory_space<vmem>>, %arg2: memref<512x256xbf16, #tpu.memory_space<vmem>>, %arg3: memref<1x256xf32, #tpu.memory_space<vmem>>, %arg4: memref<256x128xbf16, #tpu.memory_space<vmem>>, %arg5: memref<1x128xf32, #tpu.memory_space<vmem>>, %arg6: memref<1x128xf32, #tpu.memory_space<vmem>>, %arg7: memref<1x1xf32, #tpu.memory_space<smem>>, %arg8: memref<16x1xf32, #tpu.memory_space<vmem>>) attributes {dimension_semantics = [#tpu.dimension_semantics<parallel>], iteration_bounds = array<i64: 1>, scalar_prefetch = 0 : i64, scratch_operands = 0 : i64, tpu.core_type = #tpu.core_type<tc>, window_params = [{transform_indices = @transform_0, window_bounds = array<i64: 16, 512>}, {pipeline_mode = #tpu.pipeline_mode<synchronous>, transform_indices = @transform_1, window_bounds = array<i64: 512, 256>}, {pipeline_mode = #tpu.pipeline_mode<synchronous>, transform_indices = @transform_2, window_bounds = array<i64: 1, 256>}, {pipeline_mode = #tpu.pipeline_mode<synchronous>, transform_indices = @transform_3, window_bounds = array<i64: 256, 128>}, {pipeline_mode = #tpu.pipeline_mode<synchronous>, transform_indices = @transform_4, window_bounds = array<i64: 1, 128>}, {pipeline_mode = #tpu.pipeline_mode<synchronous>, transform_indices = @transform_5, window_bounds = array<i64: 1, 128>}, {transform_indices = @transform_6, window_bounds = array<i64: 1, 1>}, {transform_indices = @transform_7, window_bounds = array<i64: 16, 1>}]} {
    %c0 = arith.constant 0 : index
    %c0_0 = arith.constant 0 : index
    %0 = vector.load %arg1[%c0, %c0_0] : memref<16x512xbf16, #tpu.memory_space<vmem>>, vector<16x512xbf16>
    %c0_1 = arith.constant 0 : index
    %c0_2 = arith.constant 0 : index
    %1 = vector.load %arg2[%c0_1, %c0_2] : memref<512x256xbf16, #tpu.memory_space<vmem>>, vector<512x256xbf16>
    %cst = arith.constant dense<0.000000e+00> : vector<16x256xf32>
    %2 = tpu.matmul %0, %1, %cst {dimension_numbers = #tpu.dot_dimension_numbers<[1], [0], [0], [1], [0, 0, 1, 1], [], []>} : vector<16x512xbf16>, vector<512x256xbf16>, vector<16x256xf32> -> vector<16x256xf32>
    %c0_3 = arith.constant 0 : index
    %c0_4 = arith.constant 0 : index
    %3 = vector.load %arg3[%c0_3, %c0_4] : memref<1x256xf32, #tpu.memory_space<vmem>>, vector<1x256xf32>
    %4 = vector.broadcast %3 : vector<1x256xf32> to vector<16x256xf32>
    %5 = arith.addf %2, %4 : vector<16x256xf32>
    %cst_5 = arith.constant 0.000000e+00 : f32
    %6 = vector.broadcast %cst_5 : f32 to vector<16x256xf32>
    %7 = arith.maximumf %5, %6 : vector<16x256xf32>
    %8 = arith.truncf %7 : vector<16x256xf32> to vector<16x256xbf16>
    %c0_6 = arith.constant 0 : index
    %c0_7 = arith.constant 0 : index
    %9 = vector.load %arg4[%c0_6, %c0_7] : memref<256x128xbf16, #tpu.memory_space<vmem>>, vector<256x128xbf16>
    %cst_8 = arith.constant dense<0.000000e+00> : vector<16x128xf32>
    %10 = tpu.matmul %8, %9, %cst_8 {dimension_numbers = #tpu.dot_dimension_numbers<[1], [0], [0], [1], [0, 0, 1, 1], [], []>} : vector<16x256xbf16>, vector<256x128xbf16>, vector<16x128xf32> -> vector<16x128xf32>
    %c0_9 = arith.constant 0 : index
    %c0_10 = arith.constant 0 : index
    %11 = vector.load %arg5[%c0_9, %c0_10] : memref<1x128xf32, #tpu.memory_space<vmem>>, vector<1x128xf32>
    %12 = vector.broadcast %11 : vector<1x128xf32> to vector<16x128xf32>
    %13 = arith.addf %10, %12 : vector<16x128xf32>
    %cst_11 = arith.constant 0.000000e+00 : f32
    %14 = vector.broadcast %cst_11 : f32 to vector<16x128xf32>
    %15 = arith.maximumf %13, %14 : vector<16x128xf32>
    %c0_12 = arith.constant 0 : index
    %c0_13 = arith.constant 0 : index
    %16 = vector.load %arg6[%c0_12, %c0_13] : memref<1x128xf32, #tpu.memory_space<vmem>>, vector<1x128xf32>
    %17 = vector.broadcast %16 : vector<1x128xf32> to vector<16x128xf32>
    %18 = arith.mulf %15, %17 : vector<16x128xf32>
    %cst_14 = arith.constant dense<0.000000e+00> : vector<16xf32>
    %19 = vector.multi_reduction <add>, %18, %cst_14 [1] : vector<16x128xf32> to vector<16xf32>
    %20 = vector.shape_cast %19 : vector<16xf32> to vector<16x1xf32>
    %c0_15 = arith.constant 0 : index
    %c0_16 = arith.constant 0 : index
    %21 = memref.load %arg7[%c0_15, %c0_16] : memref<1x1xf32, #tpu.memory_space<smem>>
    %22 = vector.broadcast %21 : f32 to vector<16x1xf32>
    %23 = arith.addf %20, %22 : vector<16x1xf32>
    %24 = arith.negf %23 : vector<16x1xf32>
    %25 = math.exp %24 : vector<16x1xf32>
    %cst_17 = arith.constant 1.000000e+00 : f32
    %26 = vector.broadcast %cst_17 : f32 to vector<16x1xf32>
    %27 = arith.addf %26, %25 : vector<16x1xf32>
    %28 = arith.divf %26, %27 : vector<16x1xf32>
    %c0_18 = arith.constant 0 : index
    %c0_19 = arith.constant 0 : index
    %29 = vector.load %arg8[%c0_18, %c0_19] : memref<16x1xf32, #tpu.memory_space<vmem>>, vector<16x1xf32>
    tpu.vector_store %arg8[%c0_18, %c0_19], %28 {strides = array<i32>} : memref<16x1xf32, #tpu.memory_space<vmem>>, vector<16x1xf32>,
    return
  }
  func.func @transform_0(%arg0: i32) -> (i32, i32) {
    %c0_i32 = arith.constant 0 : i32
    %c0_i32_0 = arith.constant 0 : i32
    return %arg0, %c0_i32 : i32, i32
  }
  func.func @transform_1(%arg0: i32) -> (i32, i32) {
    %c0_i32 = arith.constant 0 : i32
    %c0_i32_0 = arith.constant 0 : i32
    %c0_i32_1 = arith.constant 0 : i32
    return %c0_i32, %c0_i32_0 : i32, i32
  }
  func.func @transform_2(%arg0: i32) -> (i32, i32) {
    %c0_i32 = arith.constant 0 : i32
    %c0_i32_0 = arith.constant 0 : i32
    %c0_i32_1 = arith.constant 0 : i32
    return %c0_i32, %c0_i32_0 : i32, i32
  }
  func.func @transform_3(%arg0: i32) -> (i32, i32) {
    %c0_i32 = arith.constant 0 : i32
    %c0_i32_0 = arith.constant 0 : i32
    %c0_i32_1 = arith.constant 0 : i32
    return %c0_i32, %c0_i32_0 : i32, i32
  }
  func.func @transform_4(%arg0: i32) -> (i32, i32) {
    %c0_i32 = arith.constant 0 : i32
    %c0_i32_0 = arith.constant 0 : i32
    %c0_i32_1 = arith.constant 0 : i32
    return %c0_i32, %c0_i32_0 : i32, i32
  }
  func.func @transform_5(%arg0: i32) -> (i32, i32) {
    %c0_i32 = arith.constant 0 : i32
    %c0_i32_0 = arith.constant 0 : i32
    %c0_i32_1 = arith.constant 0 : i32
    return %c0_i32, %c0_i32_0 : i32, i32
  }
  func.func @transform_6(%arg0: i32) -> (i32, i32) {
    %c0_i32 = arith.constant 0 : i32
    %c0_i32_0 = arith.constant 0 : i32
    %c0_i32_1 = arith.constant 0 : i32
    return %c0_i32, %c0_i32_0 : i32, i32
  }
  func.func @transform_7(%arg0: i32) -> (i32, i32) {
    %c0_i32 = arith.constant 0 : i32
    %c0_i32_0 = arith.constant 0 : i32
    return %arg0, %c0_i32 : i32, i32
  }
}

</mosaic_0001>

<llo_original>
// kernel: tpu_custom_call.1
$region0: #{tpu_custom_call.1}
  #allocation0 [shape = 'u32[]', space=smem, size = 0x4, offset = 0x4, fixed_abs, tag = 'smem constant byte address 0x4 - core index']
  #allocation1 [shape = 'u32[72,128]{1,0:T(1,128)}', space=vmem, size = 0x9000, scoped, tag = 'internal scratch']
  #allocation2 [shape = 'f32[1,1]{1,0:T(1,128)S(6)}', space=smem, size = 0x200, scoped, tag = 'scoped memory for tpu_custom_call.1']
  %s0 = inlined_call_operand.hbm [shape: bf16[16,512], index: 0, kind: input, shape index: {}]
  %s1 = inlined_call_operand.hbm [shape: bf16[512,256], index: 1, kind: input, shape index: {}]
  %s2 = inlined_call_operand.vmem [shape: f32[1,256], index: 2, kind: input, shape index: {}]
  %s3 = inlined_call_operand.hbm [shape: bf16[256,128], index: 3, kind: input, shape index: {}]
  %s4 = inlined_call_operand.vmem [shape: f32[1,128], index: 4, kind: input, shape index: {}]
  %s5 = inlined_call_operand.vmem [shape: f32[1,128], index: 5, kind: input, shape index: {}]
  %s6 = inlined_call_operand.<no memory space> [shape: f32[1,1], index: 6, kind: input, shape index: {}]
  %s7 = inlined_call_operand.vmem [shape: f32[16,1], index: 7, kind: output, shape index: {}]
  %s8 = sld [smem:[#allocation0]]
  $region50: #{tpu_custom_call.1} parent=0
    _
  %s10 = ssub.s32 1, %s8
  %s11 = scalar_select 0, %s10, %s8
  %12 = sst [smem:[#allocation2]] %s6
  $region1: #{tpu_custom_call.1} parent=0
    #allocation3 [shape = 'u8[16384]{0}', space=vmem, size = 0x4000, scoped, tag = 'input window, operand 0, single buffered']
    #allocation4 [shape = 's32[1]{0}', space=sflag, size = 0x4, scoped, tag = 'scoped memory for tpu_custom_call.1']
    #allocation5 [shape = 'u8[262144]{0}', space=vmem, size = 0x40000, scoped, tag = 'input window, operand 1, single buffered']
    #allocation6 [shape = 's32[1]{0}', space=sflag, size = 0x4, scoped, tag = 'scoped memory for tpu_custom_call.1']
    #allocation7 [shape = 'u8[65536]{0}', space=vmem, size = 0x10000, scoped, tag = 'input window, operand 3, single buffered']
    %13 = vsyncpa [#allocation4], 0
    %14 = vsyncpa [#allocation6], 0
    // Predicated region
    $region2: #{tpu_custom_call.1} parent=1 // pred_check
      _
    $region3: #{tpu_custom_call.1} parent=1 // pred_check_branch
      %16 = sbr.rel (0) target = $region5
    $region4: #{tpu_custom_call.1} parent=1 // pred_region
      %18 = vsyncadd [#allocation4], 0
      %s19 = sshll.u32 %s0, 4
      %s20 = int_to_ptr.hbm [resolvable:$true] %s19
      %s21 = sshll.u32 [#allocation3], 4
      %s22 = int_to_ptr.vmem [resolvable:$true] %s21
      %27 = dma.hbm_to_vmem [thread:$0]  %s20, 512, %s22, [#allocation4], 256, 256, 16
    $region5: #{tpu_custom_call.1} parent=1 // pred_fallthru
      _
    // Predicated region
    $region6: #{tpu_custom_call.1} parent=1 // pred_check
      _
    $region7: #{tpu_custom_call.1} parent=1 // pred_check_branch
      %29 = sbr.rel (0) target = $region9
    $region8: #{tpu_custom_call.1} parent=1 // pred_region
      %31 = vsyncadd [#allocation6], 0
      %s32 = sshll.u32 %s1, 4
      %s33 = int_to_ptr.hbm [resolvable:$true] %s32
      %s34 = sshll.u32 [#allocation5], 4
      %s35 = int_to_ptr.vmem [resolvable:$true] %s34
      %40 = dma.hbm_to_vmem [thread:$0]  %s33, 8192, %s35, [#allocation6], 128, 128, 8
    $region9: #{tpu_custom_call.1} parent=1 // pred_fallthru
      _
    // Predicated region
    $region10: #{tpu_custom_call.1} parent=1 // pred_check
      _
    $region11: #{tpu_custom_call.1} parent=1 // pred_check_branch
      %42 = sbr.rel (0) target = $region13
    $region12: #{tpu_custom_call.1} parent=1 // pred_region
      _
    $region13: #{tpu_custom_call.1} parent=1 // pred_fallthru
      _
    // Predicated region
    $region14: #{tpu_custom_call.1} parent=1 // pred_check
      _
    $region15: #{tpu_custom_call.1} parent=1 // pred_check_branch
      %44 = sbr.rel (0) target = $region17
    $region16: #{tpu_custom_call.1} parent=1 // pred_region
      %46 = vsyncadd [#allocation6], 0
      %s47 = sshll.u32 %s3, 4
      %s48 = int_to_ptr.hbm [resolvable:$true] %s47
      %s49 = sshll.u32 [#allocation7], 4
      %s50 = int_to_ptr.vmem [resolvable:$true] %s49
      %55 = dma.hbm_to_vmem [thread:$0]  %s48, 2048, %s50, [#allocation6], 64, 64, 4
    $region17: #{tpu_custom_call.1} parent=1 // pred_fallthru
      _
    // Predicated region
    $region18: #{tpu_custom_call.1} parent=1 // pred_check
      _
    $region19: #{tpu_custom_call.1} parent=1 // pred_check_branch
      %57 = sbr.rel (0) target = $region21
    $region20: #{tpu_custom_call.1} parent=1 // pred_region
      _
    $region21: #{tpu_custom_call.1} parent=1 // pred_fallthru
      _
    // Predicated region
    $region22: #{tpu_custom_call.1} parent=1 // pred_check
      _
    $region23: #{tpu_custom_call.1} parent=1 // pred_check_branch
      %59 = sbr.rel (0) target = $region25
    $region24: #{tpu_custom_call.1} parent=1 // pred_region
      _
    $region25: #{tpu_custom_call.1} parent=1 // pred_fallthru
      _
    // Predicated region
    $region26: #{tpu_custom_call.1} parent=1 // pred_check
      _
    $region27: #{tpu_custom_call.1} parent=1 // pred_check_branch
      %61 = sbr.rel (0) target = $region29
    $region28: #{tpu_custom_call.1} parent=1 // pred_region
      _
    $region29: #{tpu_custom_call.1} parent=1 // pred_fallthru
      _
    // Predicated region
    $region30: #{tpu_custom_call.1} parent=1 // pred_check
      _
    $region31: #{tpu_custom_call.1} parent=1 // pred_check_branch
      %63 = sbr.rel (0) target = $region33
    $region32: #{tpu_custom_call.1} parent=1 // pred_region
      %65 = dma.done [#allocation4], 512
    $region33: #{tpu_custom_call.1} parent=1 // pred_fallthru
      _
    // Predicated region
    $region34: #{tpu_custom_call.1} parent=1 // pred_check
      _
    $region35: #{tpu_custom_call.1} parent=1 // pred_check_branch
      %67 = sbr.rel (0) target = $region37
    $region36: #{tpu_custom_call.1} parent=1 // pred_region
      %69 = dma.done [#allocation6], 8192
    $region37: #{tpu_custom_call.1} parent=1 // pred_fallthru
      _
    // Predicated region
    $region38: #{tpu_custom_call.1} parent=1 // pred_check
      _
    $region39: #{tpu_custom_call.1} parent=1 // pred_check_branch
      %71 = sbr.rel (0) target = $region41
    $region40: #{tpu_custom_call.1} parent=1 // pred_region
      %73 = dma.done [#allocation6], 2048
    $region41: #{tpu_custom_call.1} parent=1 // pred_fallthru
      _
    %v74 = vld [vmem:[#allocation3] sm:$0xff]
    %v75 = vld [vmem:[#allocation3 + $0x8] sm:$0xff]
    %v76 = vld [vmem:[#allocation3 + $0x10] sm:$0xff]
    %v77 = vld [vmem:[#allocation3 + $0x18] sm:$0xff]
    %v78 = vld [vmem:[#allocation5] sm:$0xff]
    %v79 = vld [vmem:[#allocation5 + $0x8] sm:$0xff]
    %v80 = vld [vmem:[#allocation5 + $0x10] sm:$0xff]
    %v81 = vld [vmem:[#allocation5 + $0x18] sm:$0xff]
    %v82 = vld [vmem:[#allocation5 + $0x20] sm:$0xff]
    %v83 = vld [vmem:[#allocation5 + $0x28] sm:$0xff]
    %v84 = vld [vmem:[#allocation5 + $0x30] sm:$0xff]
    %v85 = vld [vmem:[#allocation5 + $0x38] sm:$0xff]
    %v86 = vld [vmem:[#allocation5 + $0x40] sm:$0xff]
    %v87 = vld [vmem:[#allocation5 + $0x48] sm:$0xff]
    %v88 = vld [vmem:[#allocation5 + $0x50] sm:$0xff]
    %v89 = vld [vmem:[#allocation5 + $0x58] sm:$0xff]
    %v90 = vld [vmem:[#allocation5 + $0x60] sm:$0xff]
    %v91 = vld [vmem:[#allocation5 + $0x68] sm:$0xff]
    %v92 = vld [vmem:[#allocation5 + $0x70] sm:$0xff]
    %v93 = vld [vmem:[#allocation5 + $0x78] sm:$0xff]
    %v94 = vld [vmem:[#allocation5 + $0x80] sm:$0xff]
    %v95 = vld [vmem:[#allocation5 + $0x88] sm:$0xff]
    %v96 = vld [vmem:[#allocation5 + $0x90] sm:$0xff]
    %v97 = vld [vmem:[#allocation5 + $0x98] sm:$0xff]
    %v98 = vld [vmem:[#allocation5 + $0xa0] sm:$0xff]
    %v99 = vld [vmem:[#allocation5 + $0xa8] sm:$0xff]
    %v100 = vld [vmem:[#allocation5 + $0xb0] sm:$0xff]
    %v101 = vld [vmem:[#allocation5 + $0xb8] sm:$0xff]
    %v102 = vld [vmem:[#allocation5 + $0xc0] sm:$0xff]
    %v103 = vld [vmem:[#allocation5 + $0xc8] sm:$0xff]
    %v104 = vld [vmem:[#allocation5 + $0xd0] sm:$0xff]
    %v105 = vld [vmem:[#allocation5 + $0xd8] sm:$0xff]
    %v106 = vld [vmem:[#allocation5 + $0xe0] sm:$0xff]
    %v107 = vld [vmem:[#allocation5 + $0xe8] sm:$0xff]
    %v108 = vld [vmem:[#allocation5 + $0xf0] sm:$0xff]
    %v109 = vld [vmem:[#allocation5 + $0xf8] sm:$0xff]
    %v110 = vld [vmem:[#allocation5 + $0x100] sm:$0xff]
    %v111 = vld [vmem:[#allocation5 + $0x108] sm:$0xff]
    %v112 = vld [vmem:[#allocation5 + $0x110] sm:$0xff]
    %v113 = vld [vmem:[#allocation5 + $0x118] sm:$0xff]
    %v114 = vld [vmem:[#allocation5 + $0x120] sm:$0xff]
    %v115 = vld [vmem:[#allocation5 + $0x128] sm:$0xff]
    %v116 = vld [vmem:[#allocation5 + $0x130] sm:$0xff]
    %v117 = vld [vmem:[#allocation5 + $0x138] sm:$0xff]
    %v118 = vld [vmem:[#allocation5 + $0x140] sm:$0xff]
    %v119 = vld [vmem:[#allocation5 + $0x148] sm:$0xff]
    %v120 = vld [vmem:[#allocation5 + $0x150] sm:$0xff]
    %v121 = vld [vmem:[#allocation5 + $0x158] sm:$0xff]
    %v122 = vld [vmem:[#allocation5 + $0x160] sm:$0xff]
    %v123 = vld [vmem:[#allocation5 + $0x168] sm:$0xff]
    %v124 = vld [vmem:[#allocation5 + $0x170] sm:$0xff]
    %v125 = vld [vmem:[#allocation5 + $0x178] sm:$0xff]
    %v126 = vld [vmem:[#allocation5 + $0x180] sm:$0xff]
    %v127 = vld [vmem:[#allocation5 + $0x188] sm:$0xff]
    %v128 = vld [vmem:[#allocation5 + $0x190] sm:$0xff]
    %v129 = vld [vmem:[#allocation5 + $0x198] sm:$0xff]
    %v130 = vld [vmem:[#allocation5 + $0x1a0] sm:$0xff]
    %v131 = vld [vmem:[#allocation5 + $0x1a8] sm:$0xff]
    %v132 = vld [vmem:[#allocation5 + $0x1b0] sm:$0xff]
    %v133 = vld [vmem:[#allocation5 + $0x1b8] sm:$0xff]
    %v134 = vld [vmem:[#allocation5 + $0x1c0] sm:$0xff]
    %v135 = vld [vmem:[#allocation5 + $0x1c8] sm:$0xff]
    %v136 = vld [vmem:[#allocation5 + $0x1d0] sm:$0xff]
    %v137 = vld [vmem:[#allocation5 + $0x1d8] sm:$0xff]
    %v138 = vld [vmem:[#allocation5 + $0x1e0] sm:$0xff]
    %v139 = vld [vmem:[#allocation5 + $0x1e8] sm:$0xff]
    %v140 = vld [vmem:[#allocation5 + $0x1f0] sm:$0xff]
    %v141 = vld [vmem:[#allocation5 + $0x1f8] sm:$0xff]
    %v142 = vld [vmem:[%s2] sm:$0x3]
    %v144 = vperm.slane %v142, 0
    %v145 = vperm.slane %v142, 1
    %v152 = vunpack.c.l.b16 %v74
    %v153 = vunpack.c.h.b16 %v74
    %v154 = vunpack.c.l.b16 %v75
    %v155 = vunpack.c.h.b16 %v75
    %v156 = vunpack.c.l.b16 %v76
    %v157 = vunpack.c.h.b16 %v76
    %v158 = vunpack.c.l.b16 %v77
    %v159 = vunpack.c.h.b16 %v77
    %v160 = vpack.c.b16 %v156, %v152
    %v161 = vpack.c.b16 %v157, %v153
    %v162 = vpack.c.b16 %v158, %v154
    %v163 = vpack.c.b16 %v159, %v155
    %v232 = vunpack.c.l.b16 %v78
    %v233 = vunpack.c.h.b16 %v78
    %v234 = vunpack.c.l.b16 %v79
    %v235 = vunpack.c.h.b16 %v79
    %v236 = vunpack.c.l.b16 %v80
    %v237 = vunpack.c.h.b16 %v80
    %v238 = vunpack.c.l.b16 %v81
    %v239 = vunpack.c.h.b16 %v81
    %v240 = vunpack.c.l.b16 %v82
    %v241 = vunpack.c.h.b16 %v82
    %v242 = vunpack.c.l.b16 %v83
    %v243 = vunpack.c.h.b16 %v83
    %v244 = vunpack.c.l.b16 %v84
    %v245 = vunpack.c.h.b16 %v84
    %v246 = vunpack.c.l.b16 %v85
    %v247 = vunpack.c.h.b16 %v85
    %v248 = vunpack.c.l.b16 %v86
    %v249 = vunpack.c.h.b16 %v86
    %v250 = vunpack.c.l.b16 %v87
    %v251 = vunpack.c.h.b16 %v87
    %v252 = vunpack.c.l.b16 %v88
    %v253 = vunpack.c.h.b16 %v88
    %v254 = vunpack.c.l.b16 %v89
    %v255 = vunpack.c.h.b16 %v89
    %v256 = vunpack.c.l.b16 %v90
    %v257 = vunpack.c.h.b16 %v90
    %v258 = vunpack.c.l.b16 %v91
    %v259 = vunpack.c.h.b16 %v91
    %v260 = vunpack.c.l.b16 %v92
    %v261 = vunpack.c.h.b16 %v92
    %v262 = vunpack.c.l.b16 %v93
    %v263 = vunpack.c.h.b16 %v93
    %v264 = vunpack.c.l.b16 %v94
    %v265 = vunpack.c.h.b16 %v94
    %v266 = vunpack.c.l.b16 %v95
    %v267 = vunpack.c.h.b16 %v95
    %v268 = vunpack.c.l.b16 %v96
    %v269 = vunpack.c.h.b16 %v96
    %v270 = vunpack.c.l.b16 %v97
    %v271 = vunpack.c.h.b16 %v97
    %v272 = vunpack.c.l.b16 %v98
    %v273 = vunpack.c.h.b16 %v98
    %v274 = vunpack.c.l.b16 %v99
    %v275 = vunpack.c.h.b16 %v99
    %v276 = vunpack.c.l.b16 %v100
    %v277 = vunpack.c.h.b16 %v100
    %v278 = vunpack.c.l.b16 %v101
    %v279 = vunpack.c.h.b16 %v101
    %v280 = vunpack.c.l.b16 %v102
    %v281 = vunpack.c.h.b16 %v102
    %v282 = vunpack.c.l.b16 %v103
    %v283 = vunpack.c.h.b16 %v103
    %v284 = vunpack.c.l.b16 %v104
    %v285 = vunpack.c.h.b16 %v104
    %v286 = vunpack.c.l.b16 %v105
    %v287 = vunpack.c.h.b16 %v105
    %v288 = vunpack.c.l.b16 %v106
    %v289 = vunpack.c.h.b16 %v106
    %v290 = vunpack.c.l.b16 %v107
    %v291 = vunpack.c.h.b16 %v107
    %v292 = vunpack.c.l.b16 %v108
    %v293 = vunpack.c.h.b16 %v108
    %v294 = vunpack.c.l.b16 %v109
    %v295 = vunpack.c.h.b16 %v109
    %v296 = vunpack.c.l.b16 %v110
    %v297 = vunpack.c.h.b16 %v110
    %v298 = vunpack.c.l.b16 %v111
    %v299 = vunpack.c.h.b16 %v111
    %v300 = vunpack.c.l.b16 %v112
    %v301 = vunpack.c.h.b16 %v112
    %v302 = vunpack.c.l.b16 %v113
    %v303 = vunpack.c.h.b16 %v113
    %v304 = vunpack.c.l.b16 %v114
    %v305 = vunpack.c.h.b16 %v114
    %v306 = vunpack.c.l.b16 %v115
    %v307 = vunpack.c.h.b16 %v115
    %v308 = vunpack.c.l.b16 %v116
    %v309 = vunpack.c.h.b16 %v116
    %v310 = vunpack.c.l.b16 %v117
    %v311 = vunpack.c.h.b16 %v117
    %v312 = vunpack.c.l.b16 %v118
    %v313 = vunpack.c.h.b16 %v118
    %v314 = vunpack.c.l.b16 %v119
    %v315 = vunpack.c.h.b16 %v119
    %v316 = vunpack.c.l.b16 %v120
    %v317 = vunpack.c.h.b16 %v120
    %v318 = vunpack.c.l.b16 %v121
    %v319 = vunpack.c.h.b16 %v121
    %v320 = vunpack.c.l.b16 %v122
    %v321 = vunpack.c.h.b16 %v122
    %v322 = vunpack.c.l.b16 %v123
    %v323 = vunpack.c.h.b16 %v123
    %v324 = vunpack.c.l.b16 %v124
    %v325 = vunpack.c.h.b16 %v124
    %v326 = vunpack.c.l.b16 %v125
    %v327 = vunpack.c.h.b16 %v125
    %v328 = vunpack.c.l.b16 %v126
    %v329 = vunpack.c.h.b16 %v126
    %v330 = vunpack.c.l.b16 %v127
    %v331 = vunpack.c.h.b16 %v127
    %v332 = vunpack.c.l.b16 %v128
    %v333 = vunpack.c.h.b16 %v128
    %v334 = vunpack.c.l.b16 %v129
    %v335 = vunpack.c.h.b16 %v129
    %v336 = vunpack.c.l.b16 %v130
    %v337 = vunpack.c.h.b16 %v130
    %v338 = vunpack.c.l.b16 %v131
    %v339 = vunpack.c.h.b16 %v131
    %v340 = vunpack.c.l.b16 %v132
    %v341 = vunpack.c.h.b16 %v132
    %v342 = vunpack.c.l.b16 %v133
    %v343 = vunpack.c.h.b16 %v133
    %v344 = vunpack.c.l.b16 %v134
    %v345 = vunpack.c.h.b16 %v134
    %v346 = vunpack.c.l.b16 %v135
    %v347 = vunpack.c.h.b16 %v135
    %v348 = vunpack.c.l.b16 %v136
    %v349 = vunpack.c.h.b16 %v136
    %v350 = vunpack.c.l.b16 %v137
    %v351 = vunpack.c.h.b16 %v137
    %v352 = vunpack.c.l.b16 %v138
    %v353 = vunpack.c.h.b16 %v138
    %v354 = vunpack.c.l.b16 %v139
    %v355 = vunpack.c.h.b16 %v139
    %v356 = vunpack.c.l.b16 %v140
    %v357 = vunpack.c.h.b16 %v140
    %v358 = vunpack.c.l.b16 %v141
    %v359 = vunpack.c.h.b16 %v141
    %v360 = vpack.c.b16 %v234, %v232
    %v361 = vpack.c.b16 %v235, %v233
    %v362 = vpack.c.b16 %v238, %v236
    %v363 = vpack.c.b16 %v239, %v237
    %v364 = vpack.c.b16 %v242, %v240
    %v365 = vpack.c.b16 %v243, %v241
    %v366 = vpack.c.b16 %v246, %v244
    %v367 = vpack.c.b16 %v247, %v245
    %v368 = vpack.c.b16 %v250, %v248
    %v369 = vpack.c.b16 %v251, %v249
    %v370 = vpack.c.b16 %v254, %v252
    %v371 = vpack.c.b16 %v255, %v253
    %v372 = vpack.c.b16 %v258, %v256
    %v373 = vpack.c.b16 %v259, %v257
    %v374 = vpack.c.b16 %v262, %v260
    %v375 = vpack.c.b16 %v263, %v261
    %v376 = vpack.c.b16 %v266, %v264
    %v377 = vpack.c.b16 %v267, %v265
    %v378 = vpack.c.b16 %v270, %v268
    %v379 = vpack.c.b16 %v271, %v269
    %v380 = vpack.c.b16 %v274, %v272
    %v381 = vpack.c.b16 %v275, %v273
    %v382 = vpack.c.b16 %v278, %v276
    %v383 = vpack.c.b16 %v279, %v277
    %v384 = vpack.c.b16 %v282, %v280
    %v385 = vpack.c.b16 %v283, %v281
    %v386 = vpack.c.b16 %v286, %v284
    %v387 = vpack.c.b16 %v287, %v285
    %v388 = vpack.c.b16 %v290, %v288
    %v389 = vpack.c.b16 %v291, %v289
    %v390 = vpack.c.b16 %v294, %v292
    %v391 = vpack.c.b16 %v295, %v293
    %v392 = vpack.c.b16 %v298, %v296
    %v393 = vpack.c.b16 %v299, %v297
    %v394 = vpack.c.b16 %v302, %v300
    %v395 = vpack.c.b16 %v303, %v301
    %v396 = vpack.c.b16 %v306, %v304
    %v397 = vpack.c.b16 %v307, %v305
    %v398 = vpack.c.b16 %v310, %v308
    %v399 = vpack.c.b16 %v311, %v309
    %v400 = vpack.c.b16 %v314, %v312
    %v401 = vpack.c.b16 %v315, %v313
    %v402 = vpack.c.b16 %v318, %v316
    %v403 = vpack.c.b16 %v319, %v317
    %v404 = vpack.c.b16 %v322, %v320
    %v405 = vpack.c.b16 %v323, %v321
    %v406 = vpack.c.b16 %v326, %v324
    %v407 = vpack.c.b16 %v327, %v325
    %v408 = vpack.c.b16 %v330, %v328
    %v409 = vpack.c.b16 %v331, %v329
    %v410 = vpack.c.b16 %v334, %v332
    %v411 = vpack.c.b16 %v335, %v333
    %v412 = vpack.c.b16 %v338, %v336
    %v413 = vpack.c.b16 %v339, %v337
    %v414 = vpack.c.b16 %v342, %v340
    %v415 = vpack.c.b16 %v343, %v341
    %v416 = vpack.c.b16 %v346, %v344
    %v417 = vpack.c.b16 %v347, %v345
    %v418 = vpack.c.b16 %v350, %v348
    %v419 = vpack.c.b16 %v351, %v349
    %v420 = vpack.c.b16 %v354, %v352
    %v421 = vpack.c.b16 %v355, %v353
    %v422 = vpack.c.b16 %v358, %v356
    %v423 = vpack.c.b16 %v359, %v357
    %488 = vmatpush.bf16.msra.mxu0 %v374
    %489 = vmatpush.bf16.msra.mxu0 %v372
    %490 = vmatpush.bf16.msra.mxu0 %v370
    %491 = vmatpush.bf16.msra.mxu0 %v368
    %492 = vmatpush.bf16.msra.mxu0 %v366
    %493 = vmatpush.bf16.msra.mxu0 %v364
    %494 = vmatpush.bf16.msra.mxu0 %v362
    %495 = vmatpush.bf16.msra.mxu0 %v360
    %496 = vmatmul.bf16.gmra.mxu0 %v160
    %v497 = vpop.f32.mrf.mxu0
    %v498 = vadd.f32 %v144, %v497
    %v499 = vpop.f32.mrf.mxu0
    %v500 = vadd.f32 %v144, %v499
    %501 = vdwg.mxu0
    %502 = vmatpush.bf16.msra.mxu0 %v390
    %503 = vmatpush.bf16.msra.mxu0 %v388
    %504 = vmatpush.bf16.msra.mxu0 %v386
    %505 = vmatpush.bf16.msra.mxu0 %v384
    %506 = vmatpush.bf16.msra.mxu0 %v382
    %507 = vmatpush.bf16.msra.mxu0 %v380
    %508 = vmatpush.bf16.msra.mxu0 %v378
    %509 = vmatpush.bf16.msra.mxu0 %v376
    %510 = vmatmul.bf16.gmra.mxu0 %v161
    %v511 = vpop.f32.mrf.mxu0
    %v512 = vadd.f32 %v498, %v511
    %v513 = vpop.f32.mrf.mxu0
    %v514 = vadd.f32 %v500, %v513
    %515 = vdwg.mxu0
    %516 = vmatpush.bf16.msra.mxu0 %v406
    %517 = vmatpush.bf16.msra.mxu0 %v404
    %518 = vmatpush.bf16.msra.mxu0 %v402
    %519 = vmatpush.bf16.msra.mxu0 %v400
    %520 = vmatpush.bf16.msra.mxu0 %v398
    %521 = vmatpush.bf16.msra.mxu0 %v396
    %522 = vmatpush.bf16.msra.mxu0 %v394
    %523 = vmatpush.bf16.msra.mxu0 %v392
    %524 = vmatmul.bf16.gmra.mxu0 %v162
    %v525 = vpop.f32.mrf.mxu0
    %v526 = vadd.f32 %v512, %v525
    %v527 = vpop.f32.mrf.mxu0
    %v528 = vadd.f32 %v514, %v527
    %529 = vdwg.mxu0
    %530 = vmatpush.bf16.msra.mxu0 %v422
    %531 = vmatpush.bf16.msra.mxu0 %v420
    %532 = vmatpush.bf16.msra.mxu0 %v418
    %533 = vmatpush.bf16.msra.mxu0 %v416
    %534 = vmatpush.bf16.msra.mxu0 %v414
    %535 = vmatpush.bf16.msra.mxu0 %v412
    %536 = vmatpush.bf16.msra.mxu0 %v410
    %537 = vmatpush.bf16.msra.mxu0 %v408
    %538 = vmatmul.bf16.gmra.mxu0 %v163
    %v539 = vpop.f32.mrf.mxu0
    %v540 = vadd.f32 %v526, %v539
    %v541 = vpop.f32.mrf.mxu0
    %v542 = vadd.f32 %v528, %v541
    %543 = vdwg.mxu0
    %544 = vmatpush.bf16.msra.mxu0 %v375
    %545 = vmatpush.bf16.msra.mxu0 %v373
    %546 = vmatpush.bf16.msra.mxu0 %v371
    %547 = vmatpush.bf16.msra.mxu0 %v369
    %548 = vmatpush.bf16.msra.mxu0 %v367
    %549 = vmatpush.bf16.msra.mxu0 %v365
    %550 = vmatpush.bf16.msra.mxu0 %v363
    %551 = vmatpush.bf16.msra.mxu0 %v361
    %552 = vmatmul.bf16.gmra.mxu0 %v160
    %v553 = vpop.f32.mrf.mxu0
    %v554 = vadd.f32 %v145, %v553
    %v555 = vpop.f32.mrf.mxu0
    %v556 = vadd.f32 %v145, %v555
    %557 = vdwg.mxu0
    %558 = vmatpush.bf16.msra.mxu0 %v391
    %559 = vmatpush.bf16.msra.mxu0 %v389
    %560 = vmatpush.bf16.msra.mxu0 %v387
    %561 = vmatpush.bf16.msra.mxu0 %v385
    %562 = vmatpush.bf16.msra.mxu0 %v383
    %563 = vmatpush.bf16.msra.mxu0 %v381
    %564 = vmatpush.bf16.msra.mxu0 %v379
    %565 = vmatpush.bf16.msra.mxu0 %v377
    %566 = vmatmul.bf16.gmra.mxu0 %v161
    %v567 = vpop.f32.mrf.mxu0
    %v568 = vadd.f32 %v554, %v567
    %v569 = vpop.f32.mrf.mxu0
    %v570 = vadd.f32 %v556, %v569
    %571 = vdwg.mxu0
    %572 = vmatpush.bf16.msra.mxu0 %v407
    %573 = vmatpush.bf16.msra.mxu0 %v405
    %574 = vmatpush.bf16.msra.mxu0 %v403
    %575 = vmatpush.bf16.msra.mxu0 %v401
    %576 = vmatpush.bf16.msra.mxu0 %v399
    %577 = vmatpush.bf16.msra.mxu0 %v397
    %578 = vmatpush.bf16.msra.mxu0 %v395
    %579 = vmatpush.bf16.msra.mxu0 %v393
    %580 = vmatmul.bf16.gmra.mxu0 %v162
    %v581 = vpop.f32.mrf.mxu0
    %v582 = vadd.f32 %v568, %v581
    %v583 = vpop.f32.mrf.mxu0
    %v584 = vadd.f32 %v570, %v583
    %585 = vdwg.mxu0
    %586 = vmatpush.bf16.msra.mxu0 %v423
    %587 = vmatpush.bf16.msra.mxu0 %v421
    %588 = vmatpush.bf16.msra.mxu0 %v419
    %589 = vmatpush.bf16.msra.mxu0 %v417
    %590 = vmatpush.bf16.msra.mxu0 %v415
    %591 = vmatpush.bf16.msra.mxu0 %v413
    %592 = vmatpush.bf16.msra.mxu0 %v411
    %593 = vmatpush.bf16.msra.mxu0 %v409
    %594 = vmatmul.bf16.gmra.mxu0 %v163
    %v595 = vpop.f32.mrf.mxu0
    %v596 = vadd.f32 %v582, %v595
    %v597 = vpop.f32.mrf.mxu0
    %v598 = vadd.f32 %v584, %v597
    %599 = vdwg.mxu0
    %v600 = vmax.f32 %v540, 0.0
    %v601 = vmax.f32 %v596, 0.0
    %v602 = vmax.f32 %v542, 0.0
    %v603 = vmax.f32 %v598, 0.0
    %v604 = vpack.c.bf16 %v602, %v600
    %v605 = vpack.c.bf16 %v603, %v601
    %v606 = vld [vmem:[#allocation7] sm:$0xf]
    %v607 = vld [vmem:[#allocation7 + $0x4] sm:$0xf]
    %v608 = vld [vmem:[#allocation7 + $0x8] sm:$0xf]
    %v609 = vld [vmem:[#allocation7 + $0xc] sm:$0xf]
    %v610 = vld [vmem:[#allocation7 + $0x10] sm:$0xf]
    %v611 = vld [vmem:[#allocation7 + $0x14] sm:$0xf]
    %v612 = vld [vmem:[#allocation7 + $0x18] sm:$0xf]
    %v613 = vld [vmem:[#allocation7 + $0x1c] sm:$0xf]
    %v614 = vld [vmem:[#allocation7 + $0x20] sm:$0xf]
    %v615 = vld [vmem:[#allocation7 + $0x24] sm:$0xf]
    %v616 = vld [vmem:[#allocation7 + $0x28] sm:$0xf]
    %v617 = vld [vmem:[#allocation7 + $0x2c] sm:$0xf]
    %v618 = vld [vmem:[#allocation7 + $0x30] sm:$0xf]
    %v619 = vld [vmem:[#allocation7 + $0x34] sm:$0xf]
    %v620 = vld [vmem:[#allocation7 + $0x38] sm:$0xf]
    %v621 = vld [vmem:[#allocation7 + $0x3c] sm:$0xf]
    %v622 = vld [vmem:[#allocation7 + $0x40] sm:$0xf]
    %v623 = vld [vmem:[#allocation7 + $0x44] sm:$0xf]
    %v624 = vld [vmem:[#allocation7 + $0x48] sm:$0xf]
    %v625 = vld [vmem:[#allocation7 + $0x4c] sm:$0xf]
    %v626 = vld [vmem:[#allocation7 + $0x50] sm:$0xf]
    %v627 = vld [vmem:[#allocation7 + $0x54] sm:$0xf]
    %v628 = vld [vmem:[#allocation7 + $0x58] sm:$0xf]
    %v629 = vld [vmem:[#allocation7 + $0x5c] sm:$0xf]
    %v630 = vld [vmem:[#allocation7 + $0x60] sm:$0xf]
    %v631 = vld [vmem:[#allocation7 + $0x64] sm:$0xf]
    %v632 = vld [vmem:[#allocation7 + $0x68] sm:$0xf]
    %v633 = vld [vmem:[#allocation7 + $0x6c] sm:$0xf]
    %v634 = vld [vmem:[#allocation7 + $0x70] sm:$0xf]
    %v635 = vld [vmem:[#allocation7 + $0x74] sm:$0xf]
    %v636 = vld [vmem:[#allocation7 + $0x78] sm:$0xf]
    %v637 = vld [vmem:[#allocation7 + $0x7c] sm:$0xf]
    %v638 = vld [vmem:[%s4] sm:$0x1]
    %v640 = vperm.slane %v638, 0
    %v674 = vunpack.c.l.b16 %v606
    %v675 = vunpack.c.l.b16 %v607
    %v676 = vunpack.c.l.b16 %v608
    %v677 = vunpack.c.l.b16 %v609
    %v678 = vunpack.c.l.b16 %v610
    %v679 = vunpack.c.l.b16 %v611
    %v680 = vunpack.c.l.b16 %v612
    %v681 = vunpack.c.l.b16 %v613
    %v682 = vunpack.c.l.b16 %v614
    %v683 = vunpack.c.l.b16 %v615
    %v684 = vunpack.c.l.b16 %v616
    %v685 = vunpack.c.l.b16 %v617
    %v686 = vunpack.c.l.b16 %v618
    %v687 = vunpack.c.l.b16 %v619
    %v688 = vunpack.c.l.b16 %v620
    %v689 = vunpack.c.l.b16 %v621
    %v690 = vunpack.c.l.b16 %v622
    %v691 = vunpack.c.l.b16 %v623
    %v692 = vunpack.c.l.b16 %v624
    %v693 = vunpack.c.l.b16 %v625
    %v694 = vunpack.c.l.b16 %v626
    %v695 = vunpack.c.l.b16 %v627
    %v696 = vunpack.c.l.b16 %v628
    %v697 = vunpack.c.l.b16 %v629
    %v698 = vunpack.c.l.b16 %v630
    %v699 = vunpack.c.l.b16 %v631
    %v700 = vunpack.c.l.b16 %v632
    %v701 = vunpack.c.l.b16 %v633
    %v702 = vunpack.c.l.b16 %v634
    %v703 = vunpack.c.l.b16 %v635
    %v704 = vunpack.c.l.b16 %v636
    %v705 = vunpack.c.l.b16 %v637
    %v706 = vpack.c.b16 %v675, %v674
    %v707 = vpack.c.b16 %v677, %v676
    %v708 = vpack.c.b16 %v679, %v678
    %v709 = vpack.c.b16 %v681, %v680
    %v710 = vpack.c.b16 %v683, %v682
    %v711 = vpack.c.b16 %v685, %v684
    %v712 = vpack.c.b16 %v687, %v686
    %v713 = vpack.c.b16 %v689, %v688
    %v714 = vpack.c.b16 %v691, %v690
    %v715 = vpack.c.b16 %v693, %v692
    %v716 = vpack.c.b16 %v695, %v694
    %v717 = vpack.c.b16 %v697, %v696
    %v718 = vpack.c.b16 %v699, %v698
    %v719 = vpack.c.b16 %v701, %v700
    %v720 = vpack.c.b16 %v703, %v702
    %v721 = vpack.c.b16 %v705, %v704
    %738 = vmatpush.bf16.msra.mxu0 %v713
    %739 = vmatpush.bf16.msra.mxu0 %v712
    %740 = vmatpush.bf16.msra.mxu0 %v711
    %741 = vmatpush.bf16.msra.mxu0 %v710
    %742 = vmatpush.bf16.msra.mxu0 %v709
    %743 = vmatpush.bf16.msra.mxu0 %v708
    %744 = vmatpush.bf16.msra.mxu0 %v707
    %745 = vmatpush.bf16.msra.mxu0 %v706
    %746 = vmatmul.bf16.gmra.mxu0 %v604
    %v747 = vpop.f32.mrf.mxu0
    %v748 = vadd.f32 %v640, %v747
    %v749 = vpop.f32.mrf.mxu0
    %v750 = vadd.f32 %v640, %v749
    %751 = vdwg.mxu0
    %752 = vmatpush.bf16.msra.mxu0 %v721
    %753 = vmatpush.bf16.msra.mxu0 %v720
    %754 = vmatpush.bf16.msra.mxu0 %v719
    %755 = vmatpush.bf16.msra.mxu0 %v718
    %756 = vmatpush.bf16.msra.mxu0 %v717
    %757 = vmatpush.bf16.msra.mxu0 %v716
    %758 = vmatpush.bf16.msra.mxu0 %v715
    %759 = vmatpush.bf16.msra.mxu0 %v714
    %760 = vmatmul.bf16.gmra.mxu0 %v605
    %v761 = vpop.f32.mrf.mxu0
    %v762 = vadd.f32 %v748, %v761
    %v763 = vpop.f32.mrf.mxu0
    %v764 = vadd.f32 %v750, %v763
    %765 = vdwg.mxu0
    %v766 = vmax.f32 %v762, 0.0
    %v767 = vmax.f32 %v764, 0.0
    %v768 = vld [vmem:[%s5] sm:$0x1]
    %v770 = vperm.slane %v768, 0
    %v772 = vmul.f32 %v766, %v770
    %v773 = vmul.f32 %v767, %v770
    %774 = vadd.xlane.f32.xlu0 %v772
    %v775 = vpop.xlane.xlu0 %774
    %776 = vadd.xlane.f32.xlu0 %v773
    %v777 = vpop.xlane.xlu0 %776
    %s778 = sld [smem:[#allocation2]]
    %v779 = vstv %s778
    %v780 = vadd.f32 %v775, %v779
    %v781 = vadd.f32 %v777, %v779
    %v782 = vxor.u32 %v780, 2147483648
    %v783 = vxor.u32 %v781, 2147483648
    %v784 = vmul.f32 %v782, 1.442695
    %v785 = vpow.pop %v784
    %v786 = vmul.f32 %v783, 1.442695
    %v787 = vpow.pop %v786
    %v788 = vadd.f32 %v785, 1.0
    %v789 = vadd.f32 %v787, 1.0
    %v790 = vrcp.pop %v788
    %v791 = vmul.f32 %v788, %v790
    %v792 = vsub.f32 1.0, %v791
    %v793 = vmul.f32 %v790, %v792
    %v794 = vadd.f32 %v790, %v793
    %vm795 = vweird.f32 %v788
    %vm796 = vweird.f32 %v790
    %vm797 = vmor %vm795, %vm796
    %v798 = vsel %vm797, %v790, %v794
    %v799 = vand.u32 2147483647, %v788
    %vm800 = vcmp.eq.f32.partialorder %v799, 8.507059e+37
    %v801 = vand.u32 %v788, 2147483648
    %v802 = vor.u32 1.1754944e-38, %v801
    %v803 = vsel %vm800, %v802, %v798
    %v804 = vmul.f32 1.0, %v803
    %v805 = vrcp.pop %v789
    %v806 = vmul.f32 %v789, %v805
    %v807 = vsub.f32 1.0, %v806
    %v808 = vmul.f32 %v805, %v807
    %v809 = vadd.f32 %v805, %v808
    %vm810 = vweird.f32 %v789
    %vm811 = vweird.f32 %v805
    %vm812 = vmor %vm810, %vm811
    %v813 = vsel %vm812, %v805, %v809
    %v814 = vand.u32 2147483647, %v789
    %vm815 = vcmp.eq.f32.partialorder %v814, 8.507059e+37
    %v816 = vand.u32 %v789, 2147483648
    %v817 = vor.u32 1.1754944e-38, %v816
    %v818 = vsel %vm815, %v817, %v813
    %v819 = vmul.f32 1.0, %v818
    %vm820 = vcmask 7168
    %821 = vst.msk [vmem:[%s7] sm:$0xff] %vm820, %v804
    %822 = vst.msk [vmem:[%s7 + $0x8] sm:$0xff] %vm820, %v819
    // Predicated region
    $region42: #{tpu_custom_call.1} parent=1 // pred_check
      _
    $region43: #{tpu_custom_call.1} parent=1 // pred_check_branch
      %824 = sbr.rel (0) target = $region45
    $region44: #{tpu_custom_call.1} parent=1 // pred_region
      _
    $region45: #{tpu_custom_call.1} parent=1 // pred_fallthru
      _
    // Predicated region
    $region46: #{tpu_custom_call.1} parent=1 // pred_check
      _
    $region47: #{tpu_custom_call.1} parent=1 // pred_check_branch
      %826 = sbr.rel (0) target = $region49
    $region48: #{tpu_custom_call.1} parent=1 // pred_region
      _
    $region49: #{tpu_custom_call.1} parent=1 // pred_fallthru
      _
    %827 = vsyncpa [#allocation4], 1
    %828 = vsyncpa [#allocation6], 1

</llo_original>
